<compile_context>
chip_gen: v7x
topology: tpu7x:2x2x1
jax: 0.10.0
libtpu: 0.0.40
codegen_flags: <defaults>
</compile_context>

<pallas_src>
import jax
import jax.numpy as jnp
from jax.experimental import pallas as pl
from jax.experimental.pallas import tpu as pltpu


def _tlm_kernel(a_ref, x_ref, o_ref):
    """One grid step == (bt batch elements) x (one node tile).

    a_ref: (bt, K, K)          Kronecker-expanded fused weight, K = iodim * 3**inds
    x_ref: (bt, tile_nodes, K) contiguous slab of x in its NATIVE layout
    o_ref: (bt, tile_nodes, K) output slab (native layout, lane-dense last dim K)
    """
    o_ref[...] = jax.lax.dot_general(
        x_ref[...], a_ref[...],
        dimension_numbers=(((2,), (1,)), ((0,), (0,))),
        preferred_element_type=jnp.float32,
    ).astype(o_ref.dtype)


def _choose_tiles(B, nodes, K, itemsize, target_block_bytes=1 << 20):
    """Pick (bt, tile_nodes) so each x block is ~1 MiB.

    Pipeline footprint ~= 2*x_block + 2*o_block + 2*a_block; with a 1 MiB bf16
    x block and an f32 o block that is ~6-7 MiB -> safe on all generations."""
    rows_budget = max(8, target_block_bytes // max(1, K * itemsize))
    if nodes > rows_budget:
        # Large node axis: 8-aligned node tiles, one batch element per step.
        return 1, max(8, (rows_budget // 8) * 8)
    # Whole node range fits in one block: fold batch elements to amortize the
    # ~0.35 us per-grid-step overhead.
    tile_nodes = nodes
    bt = max(1, min(B, rows_budget // max(1, nodes)))
    while B % bt:
        bt -= 1
    if B // bt < 2:                      # would be a 1x1 grid -> one v7x TC idle
        if B >= 2:
            bt = B // 2
            while B % bt:
                bt -= 1
        elif nodes >= 16:
            # Split the node axis instead (block stays 8-aligned).
            tile_nodes = ((pl.cdiv(nodes, 2) + 7) // 8) * 8
    return bt, tile_nodes


def _fused_weight(t, params, *, hdim, iodim, tail):
    """A_b = kron(W_b^T, I_tail) with W_b = Wo @ diag(emb_b) @ Wi.  f32 throughout."""
    # Sinusoidal schedule matches the given PyTorch TimeEmbedding exactly
    # (note: hdim == 1 divides by zero there too).
    ang = jnp.exp(-jnp.arange(hdim, dtype=jnp.float32) / (hdim - 1))
    phases = t.astype(jnp.float32)[:, None] * ang[None, :]
    raw = jnp.concatenate([jnp.sin(phases), jnp.cos(phases)], axis=1)      # (B, 2*hdim)
    emb = raw @ params["embed_w"].T + params["embed_b"]                    # (B, iodim)

    # W_b[p, i] = sum_o Wo[p, o] * emb[b, o] * Wi[o, i]
    w_fused = jnp.einsum("po,bo,oi->bpi", params["lin_o_w"], emb, params["lin_i_w"])

    # A_b[i*tail+t, p*tail+u] = W_b[p, i] * delta(t, u)
    eye_t = jnp.eye(tail, dtype=jnp.float32)
    K = iodim * tail
    return jnp.einsum("bpi,tu->bitpu", w_fused, eye_t).reshape(t.shape[0], K, K)


def time_linear_modulation(x, t, params, *, hdim, inds, iodim,
                           compute_dtype=jnp.bfloat16,
                           min_pallas_bytes=128 * 1024):
    """x: (batch, nodes, iodim, [3]*inds), t: (batch,) -> same shape/dtype as x."""
    B, nodes = x.shape[0], x.shape[1]
    assert x.shape[2] == iodim and x.shape[3:] == (3,) * inds
    tail = 3 ** inds
    K = iodim * tail

    a = _fused_weight(t, params, hdim=hdim, iodim=iodim, tail=tail)        # (B, K, K) f32

    # Free, contiguous view — no HBM transpose anywhere.
    x_f = x.reshape(B, nodes, K)

    if x_f.size * x_f.dtype.itemsize < min_pallas_bytes:
        # Tiny problems: pallas launch/pipeline overhead > whole compute,
        # and K < 128 would force masked partial stores.  Plain XLA is faster.
        out_f = jnp.einsum("bnk,bkq->bnq", x_f.astype(jnp.float32), a,
                           preferred_element_type=jnp.float32)
        return out_f.astype(x.dtype).reshape(x.shape)

    cd = jnp.dtype(compute_dtype)
    a_c = a.astype(cd)
    x_c = x_f if x_f.dtype == cd else x_f.astype(cd)   # no-op if caller already streams bf16

    bt, tile_nodes = _choose_tiles(B, nodes, K, cd.itemsize)

    out_f = pl.pallas_call(
        _tlm_kernel,
        out_shape=jax.ShapeDtypeStruct((B, nodes, K), x.dtype),
        grid_spec=pltpu.PrefetchScalarGridSpec(
            num_scalar_prefetch=0,
            grid=(pl.cdiv(B, bt), pl.cdiv(nodes, tile_nodes)),
            in_specs=[
                pl.BlockSpec((bt, K, K), lambda b, n: (b, 0, 0)),           # weight (batch-only)
                pl.BlockSpec((bt, tile_nodes, K), lambda b, n: (b, n, 0)),  # x slab
            ],
            out_specs=pl.BlockSpec((bt, tile_nodes, K), lambda b, n: (b, n, 0)),
        ),
        compiler_params=pltpu.CompilerParams(
            dimension_semantics=("parallel", "parallel")),
    )(a_c, x_c)

    return out_f.reshape(x.shape)


def reference(x, t, params, *, hdim, inds, iodim):
    """Pure-JAX reference reproducing the PyTorch forward (unfused, f32)."""
    ang = jnp.exp(-jnp.arange(hdim, dtype=jnp.float32) / (hdim - 1))
    phases = t[:, None] * ang[None, :]
    raw = jnp.concatenate([jnp.sin(phases), jnp.cos(phases)], axis=1)
    emb = raw @ params["embed_w"].T + params["embed_b"]            # (B, iodim)

    h = jnp.einsum("oi,bni...->bno...", params["lin_i_w"], x)      # lin_i
    mod = emb.reshape(emb.shape[0], 1, iodim, *([1] * inds))       # [:, None, :, (None,)*inds]
    h = h * mod
    return jnp.einsum("oi,bni...->bno...", params["lin_o_w"], h)   # lin_o


def init_params(key, *, hdim, iodim):
    k1, k2, k3, k4 = jax.random.split(key, 4)
    s_e = 1.0 / jnp.sqrt(2.0 * hdim)
    s_l = 1.0 / jnp.sqrt(float(iodim))
    return {
        "embed_w": jax.random.uniform(k1, (iodim, 2 * hdim), jnp.float32, -s_e, s_e),
        "embed_b": jax.random.uniform(k2, (iodim,), jnp.float32, -s_e, s_e),
        "lin_i_w": jax.random.uniform(k3, (iodim, iodim), jnp.float32, -s_l, s_l),
        "lin_o_w": jax.random.uniform(k4, (iodim, iodim), jnp.float32, -s_l, s_l),
    }


if __name__ == "__main__":
    hdim, inds, iodim = 16, 1, 32
    key = jax.random.PRNGKey(0)
    kx, kt, kp, kx2, kt2 = jax.random.split(key, 5)
    params = init_params(kp, hdim=hdim, iodim=iodim)

    # --- Pallas path: B=2, nodes=384 -> ~288 KiB of f32 activations ---
    B, nodes = 2, 384
    x = jax.random.normal(kx, (B, nodes, iodim) + (3,) * inds, jnp.float32)
    t = jax.random.uniform(kt, (B,), jnp.float32, 0.0, 10.0)
    ref = reference(x, t, params, hdim=hdim, inds=inds, iodim=iodim)

    # (1) f32-streaming pallas path: validates kernel math tightly.
    out_f32 = time_linear_modulation(x, t, params, hdim=hdim, inds=inds,
                                     iodim=iodim, compute_dtype=jnp.float32)
    out_f32 = jax.block_until_ready(out_f32)
    assert out_f32.shape == x.shape, (out_f32.shape, x.shape)
    assert jnp.allclose(out_f32, ref, rtol=1e-4, atol=1e-4), \
        float(jnp.max(jnp.abs(out_f32 - ref)))

    # (2) default bf16-streaming pallas path (halves HBM read traffic);
    #     looser tolerance because x / A_b are quantized to bf16.
    out_bf16 = jax.block_until_ready(
        time_linear_modulation(x, t, params, hdim=hdim, inds=inds, iodim=iodim))
    assert out_bf16.shape == x.shape
    assert jnp.allclose(out_bf16, ref, rtol=5e-2, atol=5e-2), \
        float(jnp.max(jnp.abs(out_bf16 - ref)))

    # (3) tiny-shape XLA fallback path.
    x2 = jax.random.normal(kx2, (2, 8, iodim) + (3,) * inds, jnp.float32)
    t2 = jax.random.uniform(kt2, (2,), jnp.float32, 0.0, 10.0)
    out_small = jax.block_until_ready(
        time_linear_modulation(x2, t2, params, hdim=hdim, inds=inds, iodim=iodim))
    ref_small = reference(x2, t2, params, hdim=hdim, inds=inds, iodim=iodim)
    assert jnp.allclose(out_small, ref_small, rtol=1e-4, atol=1e-4), \
        float(jnp.max(jnp.abs(out_small - ref_small)))

    print("KERNEL_OK")
</pallas_src>

<mosaic_0001>
module attributes {stable_mosaic.version = 11 : i64} {
  func.func @_tlm_kernel(%arg0: i32, %arg1: i32, %arg2: memref<1x96x96xf32, #tpu.memory_space<vmem>>, %arg3: memref<1x384x96xf32, #tpu.memory_space<vmem>>, %arg4: memref<1x384x96xf32, #tpu.memory_space<vmem>>) attributes {dimension_semantics = [#tpu.dimension_semantics<parallel>, #tpu.dimension_semantics<parallel>], iteration_bounds = array<i64: 2, 1>, scalar_prefetch = 0 : i64, scratch_operands = 0 : i64, tpu.core_type = #tpu.core_type<tc>, window_params = [{transform_indices = @transform_0, window_bounds = array<i64: 1, 96, 96>}, {transform_indices = @transform_1, window_bounds = array<i64: 1, 384, 96>}, {transform_indices = @transform_2, window_bounds = array<i64: 1, 384, 96>}]} {
    %c0 = arith.constant 0 : index
    %c0_0 = arith.constant 0 : index
    %c0_1 = arith.constant 0 : index
    %0 = vector.load %arg3[%c0, %c0_0, %c0_1] : memref<1x384x96xf32, #tpu.memory_space<vmem>>, vector<1x384x96xf32>
    %c0_2 = arith.constant 0 : index
    %c0_3 = arith.constant 0 : index
    %c0_4 = arith.constant 0 : index
    %1 = vector.load %arg2[%c0_2, %c0_3, %c0_4] : memref<1x96x96xf32, #tpu.memory_space<vmem>>, vector<1x96x96xf32>
    %cst = arith.constant dense<0.000000e+00> : vector<1x384x96xf32>
    %2 = tpu.matmul %0, %1, %cst {dimension_numbers = #tpu.dot_dimension_numbers<[2], [1], [1], [2], [0, 0, 0, 1, 1, 2], [0], [0]>} : vector<1x384x96xf32>, vector<1x96x96xf32>, vector<1x384x96xf32> -> vector<1x384x96xf32>
    %c0_5 = arith.constant 0 : index
    %c0_6 = arith.constant 0 : index
    %c0_7 = arith.constant 0 : index
    %3 = vector.load %arg4[%c0_5, %c0_6, %c0_7] : memref<1x384x96xf32, #tpu.memory_space<vmem>>, vector<1x384x96xf32>
    tpu.vector_store %arg4[%c0_5, %c0_6, %c0_7], %2 {strides = array<i32>} : memref<1x384x96xf32, #tpu.memory_space<vmem>>, vector<1x384x96xf32>,
    return
  }
  func.func @transform_0(%arg0: i32, %arg1: i32) -> (i32, i32, i32) {
    %c0_i32 = arith.constant 0 : i32
    %c0_i32_0 = arith.constant 0 : i32
    %c0_i32_1 = arith.constant 0 : i32
    return %arg0, %c0_i32, %c0_i32_0 : i32, i32, i32
  }
  func.func @transform_1(%arg0: i32, %arg1: i32) -> (i32, i32, i32) {
    %c0_i32 = arith.constant 0 : i32
    %c0_i32_0 = arith.constant 0 : i32
    return %arg0, %arg1, %c0_i32 : i32, i32, i32
  }
  func.func @transform_2(%arg0: i32, %arg1: i32) -> (i32, i32, i32) {
    %c0_i32 = arith.constant 0 : i32
    %c0_i32_0 = arith.constant 0 : i32
    return %arg0, %arg1, %c0_i32 : i32, i32, i32
  }
}

</mosaic_0001>

<llo_original>
// kernel: tpu_custom_call.1
$region0: #{tpu_custom_call.1}
  #allocation0 [shape = 'u32[]', space=smem, size = 0x4, offset = 0x4, fixed_abs, tag = 'smem constant byte address 0x4 - core index']
  #allocation1 [shape = 'u32[144,128]{1,0:T(1,128)}', space=vmem, size = 0x12000, scoped, tag = 'internal scratch']
  %s0 = inlined_call_operand.vmem [shape: f32[2,96,96], index: 0, kind: input, shape index: {}]
  %s1 = inlined_call_operand.vmem [shape: f32[2,384,96], index: 1, kind: input, shape index: {}]
  %s2 = inlined_call_operand.vmem [shape: f32[2,384,96], index: 2, kind: output, shape index: {}]
  %s3 = sld [smem:[#allocation0]]
  $region41: #{tpu_custom_call.1} parent=0
    _
  %s5 = ssub.s32 1, %s3
  %s6 = scalar_select 0, %s5, %s3
  loop: start=0, step=1, limit=4
  $region2: #{tpu_custom_call.1} parent=0 // loop_pre_header
    _
  $region3: #{tpu_custom_call.1} parent=0 // loop_header
    %s8 = sphi 0, %s12
    %p9 = scmp.ge.s32.totalorder %s8, 4
    %s15 = sphi 0, %s27
    %s16 = sphi 0, %s23
    %s17 = sphi 0, %s15
    %s18 = sphi 0, %s16
    %s19 = sphi 0, %s17
    %s20 = sphi 0, %s18
    %s30 = sphi 0, %s32
    %s33 = sphi 0, %s30
    %s34 = sphi 0, %s33
    %s50 = sphi 0, %s34
    %s58 = sphi 0, %s60
    %s61 = sphi 0, %s58
    %s62 = sphi 0, %s61
    %s78 = sphi 0, %s62
    %s86 = sphi 0, %s88
    %s89 = sphi 0, %s86
    %s90 = sphi 0, %s89
    %s106 = sphi 0, %s90
  $region4: #{tpu_custom_call.1} parent=0 // loop_header_branch
    %11 = sbr.rel (%p9) target = $region8
  $region5: #{tpu_custom_call.1} parent=0 // loop_body
    %s13 = ssub.s32 %s8, 1
    %s14 = ssub.s32 %s8, 2
    %s21 = sadd.s32 1, %s16
    %p22 = scmp.ge.s32.totalorder %s21, 1
    %s23 = scalar_select %p22, 0, %s21
    %s24 = sadd.s32 1, %s15
    %s25 = scalar_select %p22, %s24, %s15
    %p26 = scmp.ge.s32.totalorder %s25, 2
    %s27 = scalar_select %p26, 0, %s25
    %s28 = ssub.s32 %s15, %s27
    %p29 = scmp.eq.s32.totalorder %s28, 0
    %s31 = sadd.s32 %s30, 1
    %s32 = scalar_select %p29, %s30, %s31
    %p35 = pneg %p29
    %p36 = scmp.eq.s32.totalorder %s8, 1
    %p37 = por %p35, %p36
    %p38 = scmp.ne.s32.totalorder %s30, %s33
    %p39 = scmp.eq.s32.totalorder %s8, 0
    %p40 = por %p38, %p39
    %p41 = scmp.ne.s32.totalorder %s30, %s33
    %p42 = scmp.eq.s32.totalorder %s13, 1
    %p43 = por %p41, %p42
    %p44 = scmp.ne.s32.totalorder %s33, %s34
    %p45 = scmp.eq.s32.totalorder %s13, 0
    %p46 = por %p44, %p45
    %p47 = scmp.ne.s32.totalorder %s33, %s34
    %p48 = scmp.eq.s32.totalorder %s14, 1
    %p49 = por %p47, %p48
    %p51 = scmp.ne.s32.totalorder %s34, %s50
    %p52 = scmp.eq.s32.totalorder %s14, 0
    %p53 = por %p51, %p52
    %s54 = ssub.s32 %s15, %s27
    %s55 = ssub.s32 %s16, %s23
    %s56 = sor.u32 %s54, %s55
    %p57 = scmp.eq.s32.totalorder %s56, 0
    %s59 = sadd.s32 %s58, 1
    %s60 = scalar_select %p57, %s58, %s59
    %p63 = pneg %p57
    %p64 = scmp.eq.s32.totalorder %s8, 1
    %p65 = por %p63, %p64
    %p66 = scmp.ne.s32.totalorder %s58, %s61
    %p67 = scmp.eq.s32.totalorder %s8, 0
    %p68 = por %p66, %p67
    %p69 = scmp.ne.s32.totalorder %s58, %s61
    %p70 = scmp.eq.s32.totalorder %s13, 1
    %p71 = por %p69, %p70
    %p72 = scmp.ne.s32.totalorder %s61, %s62
    %p73 = scmp.eq.s32.totalorder %s13, 0
    %p74 = por %p72, %p73
    %p75 = scmp.ne.s32.totalorder %s61, %s62
    %p76 = scmp.eq.s32.totalorder %s14, 1
    %p77 = por %p75, %p76
    %p79 = scmp.ne.s32.totalorder %s62, %s78
    %p80 = scmp.eq.s32.totalorder %s14, 0
    %p81 = por %p79, %p80
    %s82 = ssub.s32 %s15, %s27
    %s83 = ssub.s32 %s16, %s23
    %s84 = sor.u32 %s82, %s83
    %p85 = scmp.eq.s32.totalorder %s84, 0
    %s87 = sadd.s32 %s86, 1
    %s88 = scalar_select %p85, %s86, %s87
    %p91 = pneg %p85
    %p92 = scmp.eq.s32.totalorder %s8, 1
    %p93 = por %p91, %p92
    %p94 = scmp.ne.s32.totalorder %s86, %s89
    %p95 = scmp.eq.s32.totalorder %s8, 0
    %p96 = por %p94, %p95
    %p97 = scmp.ne.s32.totalorder %s86, %s89
    %p98 = scmp.eq.s32.totalorder %s13, 1
    %p99 = por %p97, %p98
    %p100 = scmp.ne.s32.totalorder %s89, %s90
    %p101 = scmp.eq.s32.totalorder %s13, 0
    %p102 = por %p100, %p101
    %p103 = scmp.ne.s32.totalorder %s89, %s90
    %p104 = scmp.eq.s32.totalorder %s14, 1
    %p105 = por %p103, %p104
    %p107 = scmp.ne.s32.totalorder %s90, %s106
    %p108 = scmp.eq.s32.totalorder %s14, 0
    %p109 = por %p107, %p108
    %p110 = scmp.le.s32.totalorder 1, %s8
    %p111 = scmp.lt.s32.totalorder %s8, 3
    %p112 = pnand %p110, %p111
    %p113 = pneg %p112
    // Predicated region
    $region9: #{tpu_custom_call.1} parent=5 // pred_check
      _
    $region10: #{tpu_custom_call.1} parent=5 // pred_check_branch
      %115 = sbr.rel (%p112) target = $region12
    $region11: #{tpu_custom_call.1} parent=5 // pred_region
      %s116 = ssub.s32 %s8, 1
    $region12: #{tpu_custom_call.1} parent=5 // pred_fallthru
      _
    %p117 = scmp.lt.s32.totalorder %s8, 2
    // Predicated region
    $region13: #{tpu_custom_call.1} parent=5 // pred_check
      %p118 = pneg %p117
    $region14: #{tpu_custom_call.1} parent=5 // pred_check_branch
      %120 = sbr.rel (%p118) target = $region16
    $region15: #{tpu_custom_call.1} parent=5 // pred_region
      // Predicated region
      $region17: #{tpu_custom_call.1} parent=15 // pred_check
        %p121 = pneg %p40
      $region18: #{tpu_custom_call.1} parent=15 // pred_check_branch
        %123 = sbr.rel (%p121) target = $region20
      $region19: #{tpu_custom_call.1} parent=15 // pred_region
        %p124 = scmp.lt.s32.totalorder %s15, 1
        %s125 = scalar_select %p124, %s15, 1
        %s126 = smul.addr %s125, 12
        %s127 = smul.addr %s126, 8
        %s128 = scalar_lea.vmem %s0, %s127
      $region20: #{tpu_custom_call.1} parent=15 // pred_fallthru
        _
      // Predicated region
      $region21: #{tpu_custom_call.1} parent=15 // pred_check
        %p129 = pneg %p68
      $region22: #{tpu_custom_call.1} parent=15 // pred_check_branch
        %131 = sbr.rel (%p129) target = $region24
      $region23: #{tpu_custom_call.1} parent=15 // pred_region
        %s132 = smul.u32 48, %s16
        %p133 = scmp.lt.s32.totalorder %s15, 1
        %s134 = scalar_select %p133, %s15, 1
        %p135 = scmp.lt.s32.totalorder %s132, 47
        %s136 = scalar_select %p135, %s132, 47
        %s137 = smul.addr %s134, 48
        %s138 = sadd.s32 %s136, %s137
        %s139 = smul.addr %s138, 8
        %s140 = scalar_lea.vmem %s1, %s139
        %s141 = smul.u32 48, %s16
      $region24: #{tpu_custom_call.1} parent=15 // pred_fallthru
        _
    $region16: #{tpu_custom_call.1} parent=5 // pred_fallthru
      _
    %p142 = scmp.le.s32.totalorder 1, %s8
    %p143 = scmp.lt.s32.totalorder %s8, 3
    %p144 = pnand %p142, %p143
    %p145 = pneg %p144
    // Predicated region
    $region25: #{tpu_custom_call.1} parent=5 // pred_check
      _
    $region26: #{tpu_custom_call.1} parent=5 // pred_check_branch
      %147 = sbr.rel (%p144) target = $region28
    $region27: #{tpu_custom_call.1} parent=5 // pred_region
      %s148 = ssub.s32 %s8, 1
      %p149 = scmp.lt.s32.totalorder %s17, 1
      %s150 = scalar_select %p149, %s17, 1
      %s151 = smul.addr %s150, 12
      %s152 = smul.addr %s151, 8
      %s153 = scalar_lea.vmem %s0, %s152
      %p154 = pneg %p46
      %p155 = pneg %p43
      %s156 = smul.u32 48, %s18
      %p157 = scmp.lt.s32.totalorder %s17, 1
      %s158 = scalar_select %p157, %s17, 1
      %p159 = scmp.lt.s32.totalorder %s156, 47
      %s160 = scalar_select %p159, %s156, 47
      %s161 = smul.addr %s158, 48
      %s162 = sadd.s32 %s160, %s161
      %s163 = smul.addr %s162, 8
      %s164 = scalar_lea.vmem %s1, %s163
      %p165 = pneg %p74
      %p166 = pneg %p71
      %p167 = pneg %p102
      %p168 = pneg %p99
      %s169 = smul.u32 48, %s18
      %p170 = scmp.lt.s32.totalorder %s17, 1
      %s171 = scalar_select %p170, %s17, 1
      %p172 = scmp.lt.s32.totalorder %s169, 47
      %s173 = scalar_select %p172, %s169, 47
      %s174 = smul.addr %s171, 48
      %s175 = sadd.s32 %s173, %s174
      %s176 = smul.addr %s175, 8
      %s177 = scalar_lea.vmem %s2, %s176
      %p178 = scmp.lt.s32.totalorder %s17, 1
      %s179 = scalar_select %p178, %s17, 1
      %s180 = smul.addr %s179, 12
      %s181 = smul.addr %s180, 8
      %s182 = scalar_lea.vmem %s0, %s181
      %s183 = smul.u32 48, %s18
      %p184 = scmp.lt.s32.totalorder %s17, 1
      %s185 = scalar_select %p184, %s17, 1
      %p186 = scmp.lt.s32.totalorder %s183, 47
      %s187 = scalar_select %p186, %s183, 47
      %s188 = smul.addr %s185, 48
      %s189 = sadd.s32 %s187, %s188
      %s190 = smul.addr %s189, 8
      %s191 = scalar_lea.vmem %s1, %s190
      %s192 = smul.u32 48, %s18
      %s193 = smul.u32 48, %s18
      %p194 = scmp.lt.s32.totalorder %s17, 1
      %s195 = scalar_select %p194, %s17, 1
      %p196 = scmp.lt.s32.totalorder %s193, 47
      %s197 = scalar_select %p196, %s193, 47
      %s198 = smul.addr %s195, 48
      %s199 = sadd.s32 %s197, %s198
      %s200 = smul.addr %s199, 8
      %s201 = scalar_lea.vmem %s2, %s200
      %s202 = smul.u32 48, %s18
      %v203 = vld [vmem:[%s191] sm:$0xff]
      %v204 = vld [vmem:[%s191 + $0x8] sm:$0xff]
      %v205 = vld [vmem:[%s191 + $0x10] sm:$0xff]
      %v206 = vld [vmem:[%s191 + $0x18] sm:$0xff]
      %v207 = vld [vmem:[%s191 + $0x20] sm:$0xff]
      %v208 = vld [vmem:[%s191 + $0x28] sm:$0xff]
      %v209 = vld [vmem:[%s191 + $0x30] sm:$0xff]
      %v210 = vld [vmem:[%s191 + $0x38] sm:$0xff]
      %v211 = vld [vmem:[%s191 + $0x40] sm:$0xff]
      %v212 = vld [vmem:[%s191 + $0x48] sm:$0xff]
      %v213 = vld [vmem:[%s191 + $0x50] sm:$0xff]
      %v214 = vld [vmem:[%s191 + $0x58] sm:$0xff]
      %v215 = vld [vmem:[%s191 + $0x60] sm:$0xff]
      %v216 = vld [vmem:[%s191 + $0x68] sm:$0xff]
      %v217 = vld [vmem:[%s191 + $0x70] sm:$0xff]
      %v218 = vld [vmem:[%s191 + $0x78] sm:$0xff]
      %v219 = vld [vmem:[%s191 + $0x80] sm:$0xff]
      %v220 = vld [vmem:[%s191 + $0x88] sm:$0xff]
      %v221 = vld [vmem:[%s191 + $0x90] sm:$0xff]
      %v222 = vld [vmem:[%s191 + $0x98] sm:$0xff]
      %v223 = vld [vmem:[%s191 + $0xa0] sm:$0xff]
      %v224 = vld [vmem:[%s191 + $0xa8] sm:$0xff]
      %v225 = vld [vmem:[%s191 + $0xb0] sm:$0xff]
      %v226 = vld [vmem:[%s191 + $0xb8] sm:$0xff]
      %v227 = vld [vmem:[%s191 + $0xc0] sm:$0xff]
      %v228 = vld [vmem:[%s191 + $0xc8] sm:$0xff]
      %v229 = vld [vmem:[%s191 + $0xd0] sm:$0xff]
      %v230 = vld [vmem:[%s191 + $0xd8] sm:$0xff]
      %v231 = vld [vmem:[%s191 + $0xe0] sm:$0xff]
      %v232 = vld [vmem:[%s191 + $0xe8] sm:$0xff]
      %v233 = vld [vmem:[%s191 + $0xf0] sm:$0xff]
      %v234 = vld [vmem:[%s191 + $0xf8] sm:$0xff]
      %v235 = vld [vmem:[%s191 + $0x100] sm:$0xff]
      %v236 = vld [vmem:[%s191 + $0x108] sm:$0xff]
      %v237 = vld [vmem:[%s191 + $0x110] sm:$0xff]
      %v238 = vld [vmem:[%s191 + $0x118] sm:$0xff]
      %v239 = vld [vmem:[%s191 + $0x120] sm:$0xff]
      %v240 = vld [vmem:[%s191 + $0x128] sm:$0xff]
      %v241 = vld [vmem:[%s191 + $0x130] sm:$0xff]
      %v242 = vld [vmem:[%s191 + $0x138] sm:$0xff]
      %v243 = vld [vmem:[%s191 + $0x140] sm:$0xff]
      %v244 = vld [vmem:[%s191 + $0x148] sm:$0xff]
      %v245 = vld [vmem:[%s191 + $0x150] sm:$0xff]
      %v246 = vld [vmem:[%s191 + $0x158] sm:$0xff]
      %v247 = vld [vmem:[%s191 + $0x160] sm:$0xff]
      %v248 = vld [vmem:[%s191 + $0x168] sm:$0xff]
      %v249 = vld [vmem:[%s191 + $0x170] sm:$0xff]
      %v250 = vld [vmem:[%s191 + $0x178] sm:$0xff]
      %v251 = vld [vmem:[%s182] sm:$0xff]
      %v252 = vld [vmem:[%s182 + $0x8] sm:$0xff]
      %v253 = vld [vmem:[%s182 + $0x10] sm:$0xff]
      %v254 = vld [vmem:[%s182 + $0x18] sm:$0xff]
      %v255 = vld [vmem:[%s182 + $0x20] sm:$0xff]
      %v256 = vld [vmem:[%s182 + $0x28] sm:$0xff]
      %v257 = vld [vmem:[%s182 + $0x30] sm:$0xff]
      %v258 = vld [vmem:[%s182 + $0x38] sm:$0xff]
      %v259 = vld [vmem:[%s182 + $0x40] sm:$0xff]
      %v260 = vld [vmem:[%s182 + $0x48] sm:$0xff]
      %v261 = vld [vmem:[%s182 + $0x50] sm:$0xff]
      %v262 = vld [vmem:[%s182 + $0x58] sm:$0xff]
      %vm263 = vcmask 785408
      %v265 = vsel %vm263, %v203, 0
      %v268 = vsel %vm263, %v204, 0
      %v271 = vsel %vm263, %v205, 0
      %v274 = vsel %vm263, %v206, 0
      %v277 = vsel %vm263, %v207, 0
      %v280 = vsel %vm263, %v208, 0
      %v283 = vsel %vm263, %v209, 0
      %v286 = vsel %vm263, %v210, 0
      %v289 = vsel %vm263, %v211, 0
      %v292 = vsel %vm263, %v212, 0
      %v295 = vsel %vm263, %v213, 0
      %v298 = vsel %vm263, %v214, 0
      %v301 = vsel %vm263, %v215, 0
      %v304 = vsel %vm263, %v216, 0
      %v307 = vsel %vm263, %v217, 0
      %v310 = vsel %vm263, %v218, 0
      %v313 = vsel %vm263, %v219, 0
      %v316 = vsel %vm263, %v220, 0
      %v319 = vsel %vm263, %v221, 0
      %v322 = vsel %vm263, %v222, 0
      %v325 = vsel %vm263, %v223, 0
      %v328 = vsel %vm263, %v224, 0
      %v331 = vsel %vm263, %v225, 0
      %v334 = vsel %vm263, %v226, 0
      %v337 = vsel %vm263, %v227, 0
      %v340 = vsel %vm263, %v228, 0
      %v343 = vsel %vm263, %v229, 0
      %v346 = vsel %vm263, %v230, 0
      %v349 = vsel %vm263, %v231, 0
      %v352 = vsel %vm263, %v232, 0
      %v355 = vsel %vm263, %v233, 0
      %v358 = vsel %vm263, %v234, 0
      %v361 = vsel %vm263, %v235, 0
      %v364 = vsel %vm263, %v236, 0
      %v367 = vsel %vm263, %v237, 0
      %v370 = vsel %vm263, %v238, 0
      %v373 = vsel %vm263, %v239, 0
      %v376 = vsel %vm263, %v240, 0
      %v379 = vsel %vm263, %v241, 0
      %v382 = vsel %vm263, %v242, 0
      %v385 = vsel %vm263, %v243, 0
      %v388 = vsel %vm263, %v244, 0
      %v391 = vsel %vm263, %v245, 0
      %v394 = vsel %vm263, %v246, 0
      %v397 = vsel %vm263, %v247, 0
      %v400 = vsel %vm263, %v248, 0
      %v403 = vsel %vm263, %v249, 0
      %v406 = vsel %vm263, %v250, 0
      %408 = vmatprep.subr.mxu0 0.0
      %409 = vmatpush1.msra.mxu0 %v251
      %410 = vmatprep.subr.mxu0 0.0
      %411 = vmatpush1.msra.mxu0 %v252
      %412 = vmatprep.subr.mxu0 0.0
      %413 = vmatpush1.msra.mxu0 %v253
      %414 = vmatprep.subr.mxu0 0.0
      %415 = vmatpush1.msra.mxu0 %v254
      %416 = vmatprep.subr.mxu0 0.0
      %417 = vmatpush1.msra.mxu0 %v255
      %418 = vmatprep.subr.mxu0 0.0
      %419 = vmatpush1.msra.mxu0 %v256
      %420 = vmatprep.subr.mxu0 0.0
      %421 = vmatpush1.msra.mxu0 %v257
      %422 = vmatprep.subr.mxu0 0.0
      %423 = vmatpush1.msra.mxu0 %v258
      %424 = vmatprep.subr.mxu0 0.0
      %425 = vmatpush1.msra.mxu0 %v259
      %426 = vmatprep.subr.mxu0 0.0
      %427 = vmatpush1.msra.mxu0 %v260
      %428 = vmatprep.subr.mxu0 0.0
      %429 = vmatpush1.msra.mxu0 %v261
      %430 = vmatprep.subr.mxu0 0.0
      %431 = vmatpush1.msra.mxu0 %v262
      %432 = vmatprep.subr.mxu0 0.0
      %433 = vmatpush1.msra.mxu0 0.0
      %434 = vmatprep.subr.mxu0 0.0
      %435 = vmatpush1.msra.mxu0 0.0
      %436 = vmatprep.subr.mxu0 0.0
      %437 = vmatpush1.msra.mxu0 0.0
      %438 = vmatprep.subr.mxu0 0.0
      %439 = vmatpush1.msra.mxu0 0.0
      %440 = vmatprep.subr.mxu0 0.0
      %441 = vmatpush1.msra.mxu0 0.0
      %442 = vmatprep.subr.mxu0 0.0
      %443 = vmatpush1.msra.mxu0 0.0
      %444 = vmatprep.subr.mxu0 0.0
      %445 = vmatpush1.msra.mxu0 0.0
      %446 = vmatprep.subr.mxu0 0.0
      %447 = vmatpush1.msra.mxu0 0.0
      %448 = vmatprep.subr.mxu0 0.0
      %449 = vmatpush1.msra.mxu0 0.0
      %450 = vmatprep.subr.mxu0 0.0
      %451 = vmatpush1.msra.mxu0 0.0
      %452 = vmatprep.subr.mxu0 0.0
      %453 = vmatpush1.msra.mxu0 0.0
      %454 = vmatprep.subr.mxu0 0.0
      %455 = vmatpush1.msra.mxu0 0.0
      %456 = vmatprep.subr.mxu0 0.0
      %457 = vmatpush1.msra.mxu0 0.0
      %458 = vmatprep.subr.mxu0 0.0
      %459 = vmatpush1.msra.mxu0 0.0
      %460 = vmatprep.subr.mxu0 0.0
      %461 = vmatpush1.msra.mxu0 0.0
      %462 = vmatprep.subr.mxu0 0.0
      %463 = vmatpush1.msra.mxu0 0.0
      %464 = vmatprep.subr.mxu0 0.0
      %465 = vmatpush1.msra.mxu0 0.0
      %466 = vmatprep.subr.mxu0 0.0
      %467 = vmatpush1.msra.mxu0 0.0
      %468 = vmatprep.subr.mxu0 0.0
      %469 = vmatpush1.msra.mxu0 0.0
      %470 = vmatprep.subr.mxu0 0.0
      %471 = vmatpush1.msra.mxu0 0.0
      %472 = vmatprep.mubr.f32.mxu0 0.0
      %473 = vmatmul.mubr.f32.gmra.mrb[0].mxu0 %v265
      %v474 = vpop.f32.mrb[0].mxu0
      %v475 = vadd.f32 0.0, %v474
      %v476 = vpop.f32.mrb[0].mxu0
      %477 = vmatprep.mubr.f32.mxu0 0.0
      %478 = vmatmul.mubr.f32.gmra.mrb[0].mxu0 %v268
      %v479 = vpop.f32.mrb[0].mxu0
      %v480 = vadd.f32 0.0, %v479
      %v481 = vpop.f32.mrb[0].mxu0
      %482 = vmatprep.mubr.f32.mxu0 0.0
      %483 = vmatmul.mubr.f32.gmra.mrb[0].mxu0 %v271
      %v484 = vpop.f32.mrb[0].mxu0
      %v485 = vadd.f32 0.0, %v484
      %v486 = vpop.f32.mrb[0].mxu0
      %487 = vmatprep.mubr.f32.mxu0 0.0
      %488 = vmatmul.mubr.f32.gmra.mrb[0].mxu0 %v274
      %v489 = vpop.f32.mrb[0].mxu0
      %v490 = vadd.f32 0.0, %v489
      %v491 = vpop.f32.mrb[0].mxu0
      %492 = vmatprep.mubr.f32.mxu0 0.0
      %493 = vmatmul.mubr.f32.gmra.mrb[0].mxu0 %v277
      %v494 = vpop.f32.mrb[0].mxu0
      %v495 = vadd.f32 0.0, %v494
      %v496 = vpop.f32.mrb[0].mxu0
      %497 = vmatprep.mubr.f32.mxu0 0.0
      %498 = vmatmul.mubr.f32.gmra.mrb[0].mxu0 %v280
      %v499 = vpop.f32.mrb[0].mxu0
      %v500 = vadd.f32 0.0, %v499
      %v501 = vpop.f32.mrb[0].mxu0
      %502 = vmatprep.mubr.f32.mxu0 0.0
      %503 = vmatmul.mubr.f32.gmra.mrb[0].mxu0 %v283
      %v504 = vpop.f32.mrb[0].mxu0
      %v505 = vadd.f32 0.0, %v504
      %v506 = vpop.f32.mrb[0].mxu0
      %507 = vmatprep.mubr.f32.mxu0 0.0
      %508 = vmatmul.mubr.f32.gmra.mrb[0].mxu0 %v286
      %v509 = vpop.f32.mrb[0].mxu0
      %v510 = vadd.f32 0.0, %v509
      %v511 = vpop.f32.mrb[0].mxu0
      %512 = vmatprep.mubr.f32.mxu0 0.0
      %513 = vmatmul.mubr.f32.gmra.mrb[0].mxu0 %v289
      %v514 = vpop.f32.mrb[0].mxu0
      %v515 = vadd.f32 0.0, %v514
      %v516 = vpop.f32.mrb[0].mxu0
      %517 = vmatprep.mubr.f32.mxu0 0.0
      %518 = vmatmul.mubr.f32.gmra.mrb[0].mxu0 %v292
      %v519 = vpop.f32.mrb[0].mxu0
      %v520 = vadd.f32 0.0, %v519
      %v521 = vpop.f32.mrb[0].mxu0
      %522 = vmatprep.mubr.f32.mxu0 0.0
      %523 = vmatmul.mubr.f32.gmra.mrb[0].mxu0 %v295
      %v524 = vpop.f32.mrb[0].mxu0
      %v525 = vadd.f32 0.0, %v524
      %v526 = vpop.f32.mrb[0].mxu0
      %527 = vmatprep.mubr.f32.mxu0 0.0
      %528 = vmatmul.mubr.f32.gmra.mrb[0].mxu0 %v298
      %v529 = vpop.f32.mrb[0].mxu0
      %v530 = vadd.f32 0.0, %v529
      %v531 = vpop.f32.mrb[0].mxu0
      %532 = vmatprep.mubr.f32.mxu0 0.0
      %533 = vmatmul.mubr.f32.gmra.mrb[0].mxu0 %v301
      %v534 = vpop.f32.mrb[0].mxu0
      %v535 = vadd.f32 0.0, %v534
      %v536 = vpop.f32.mrb[0].mxu0
      %537 = vmatprep.mubr.f32.mxu0 0.0
      %538 = vmatmul.mubr.f32.gmra.mrb[0].mxu0 %v304
      %v539 = vpop.f32.mrb[0].mxu0
      %v540 = vadd.f32 0.0, %v539
      %v541 = vpop.f32.mrb[0].mxu0
      %542 = vmatprep.mubr.f32.mxu0 0.0
      %543 = vmatmul.mubr.f32.gmra.mrb[0].mxu0 %v307
      %v544 = vpop.f32.mrb[0].mxu0
      %v545 = vadd.f32 0.0, %v544
      %v546 = vpop.f32.mrb[0].mxu0
      %547 = vmatprep.mubr.f32.mxu0 0.0
      %548 = vmatmul.mubr.f32.gmra.mrb[0].mxu0 %v310
      %v549 = vpop.f32.mrb[0].mxu0
      %v550 = vadd.f32 0.0, %v549
      %v551 = vpop.f32.mrb[0].mxu0
      %552 = vmatprep.mubr.f32.mxu0 0.0
      %553 = vmatmul.mubr.f32.gmra.mrb[0].mxu0 %v313
      %v554 = vpop.f32.mrb[0].mxu0
      %v555 = vadd.f32 0.0, %v554
      %v556 = vpop.f32.mrb[0].mxu0
      %557 = vmatprep.mubr.f32.mxu0 0.0
      %558 = vmatmul.mubr.f32.gmra.mrb[0].mxu0 %v316
      %v559 = vpop.f32.mrb[0].mxu0
      %v560 = vadd.f32 0.0, %v559
      %v561 = vpop.f32.mrb[0].mxu0
      %562 = vmatprep.mubr.f32.mxu0 0.0
      %563 = vmatmul.mubr.f32.gmra.mrb[0].mxu0 %v319
      %v564 = vpop.f32.mrb[0].mxu0
      %v565 = vadd.f32 0.0, %v564
      %v566 = vpop.f32.mrb[0].mxu0
      %567 = vmatprep.mubr.f32.mxu0 0.0
      %568 = vmatmul.mubr.f32.gmra.mrb[0].mxu0 %v322
      %v569 = vpop.f32.mrb[0].mxu0
      %v570 = vadd.f32 0.0, %v569
      %v571 = vpop.f32.mrb[0].mxu0
      %572 = vmatprep.mubr.f32.mxu0 0.0
      %573 = vmatmul.mubr.f32.gmra.mrb[0].mxu0 %v325
      %v574 = vpop.f32.mrb[0].mxu0
      %v575 = vadd.f32 0.0, %v574
      %v576 = vpop.f32.mrb[0].mxu0
      %577 = vmatprep.mubr.f32.mxu0 0.0
      %578 = vmatmul.mubr.f32.gmra.mrb[0].mxu0 %v328
      %v579 = vpop.f32.mrb[0].mxu0
      %v580 = vadd.f32 0.0, %v579
      %v581 = vpop.f32.mrb[0].mxu0
      %582 = vmatprep.mubr.f32.mxu0 0.0
      %583 = vmatmul.mubr.f32.gmra.mrb[0].mxu0 %v331
      %v584 = vpop.f32.mrb[0].mxu0
      %v585 = vadd.f32 0.0, %v584
      %v586 = vpop.f32.mrb[0].mxu0
      %587 = vmatprep.mubr.f32.mxu0 0.0
      %588 = vmatmul.mubr.f32.gmra.mrb[0].mxu0 %v334
      %v589 = vpop.f32.mrb[0].mxu0
      %v590 = vadd.f32 0.0, %v589
      %v591 = vpop.f32.mrb[0].mxu0
      %592 = vmatprep.mubr.f32.mxu0 0.0
      %593 = vmatmul.mubr.f32.gmra.mrb[0].mxu0 %v337
      %v594 = vpop.f32.mrb[0].mxu0
      %v595 = vadd.f32 0.0, %v594
      %v596 = vpop.f32.mrb[0].mxu0
      %597 = vmatprep.mubr.f32.mxu0 0.0
      %598 = vmatmul.mubr.f32.gmra.mrb[0].mxu0 %v340
      %v599 = vpop.f32.mrb[0].mxu0
      %v600 = vadd.f32 0.0, %v599
      %v601 = vpop.f32.mrb[0].mxu0
      %602 = vmatprep.mubr.f32.mxu0 0.0
      %603 = vmatmul.mubr.f32.gmra.mrb[0].mxu0 %v343
      %v604 = vpop.f32.mrb[0].mxu0
      %v605 = vadd.f32 0.0, %v604
      %v606 = vpop.f32.mrb[0].mxu0
      %607 = vmatprep.mubr.f32.mxu0 0.0
      %608 = vmatmul.mubr.f32.gmra.mrb[0].mxu0 %v346
      %v609 = vpop.f32.mrb[0].mxu0
      %v610 = vadd.f32 0.0, %v609
      %v611 = vpop.f32.mrb[0].mxu0
      %612 = vmatprep.mubr.f32.mxu0 0.0
      %613 = vmatmul.mubr.f32.gmra.mrb[0].mxu0 %v349
      %v614 = vpop.f32.mrb[0].mxu0
      %v615 = vadd.f32 0.0, %v614
      %v616 = vpop.f32.mrb[0].mxu0
      %617 = vmatprep.mubr.f32.mxu0 0.0
      %618 = vmatmul.mubr.f32.gmra.mrb[0].mxu0 %v352
      %v619 = vpop.f32.mrb[0].mxu0
      %v620 = vadd.f32 0.0, %v619
      %v621 = vpop.f32.mrb[0].mxu0
      %622 = vmatprep.mubr.f32.mxu0 0.0
      %623 = vmatmul.mubr.f32.gmra.mrb[0].mxu0 %v355
      %v624 = vpop.f32.mrb[0].mxu0
      %v625 = vadd.f32 0.0, %v624
      %v626 = vpop.f32.mrb[0].mxu0
      %627 = vmatprep.mubr.f32.mxu0 0.0
      %628 = vmatmul.mubr.f32.gmra.mrb[0].mxu0 %v358
      %v629 = vpop.f32.mrb[0].mxu0
      %v630 = vadd.f32 0.0, %v629
      %v631 = vpop.f32.mrb[0].mxu0
      %632 = vmatprep.mubr.f32.mxu0 0.0
      %633 = vmatmul.mubr.f32.gmra.mrb[0].mxu0 %v361
      %v634 = vpop.f32.mrb[0].mxu0
      %v635 = vadd.f32 0.0, %v634
      %v636 = vpop.f32.mrb[0].mxu0
      %637 = vmatprep.mubr.f32.mxu0 0.0
      %638 = vmatmul.mubr.f32.gmra.mrb[0].mxu0 %v364
      %v639 = vpop.f32.mrb[0].mxu0
      %v640 = vadd.f32 0.0, %v639
      %v641 = vpop.f32.mrb[0].mxu0
      %642 = vmatprep.mubr.f32.mxu0 0.0
      %643 = vmatmul.mubr.f32.gmra.mrb[0].mxu0 %v367
      %v644 = vpop.f32.mrb[0].mxu0
      %v645 = vadd.f32 0.0, %v644
      %v646 = vpop.f32.mrb[0].mxu0
      %647 = vmatprep.mubr.f32.mxu0 0.0
      %648 = vmatmul.mubr.f32.gmra.mrb[0].mxu0 %v370
      %v649 = vpop.f32.mrb[0].mxu0
      %v650 = vadd.f32 0.0, %v649
      %v651 = vpop.f32.mrb[0].mxu0
      %652 = vmatprep.mubr.f32.mxu0 0.0
      %653 = vmatmul.mubr.f32.gmra.mrb[0].mxu0 %v373
      %v654 = vpop.f32.mrb[0].mxu0
      %v655 = vadd.f32 0.0, %v654
      %v656 = vpop.f32.mrb[0].mxu0
      %657 = vmatprep.mubr.f32.mxu0 0.0
      %658 = vmatmul.mubr.f32.gmra.mrb[0].mxu0 %v376
      %v659 = vpop.f32.mrb[0].mxu0
      %v660 = vadd.f32 0.0, %v659
      %v661 = vpop.f32.mrb[0].mxu0
      %662 = vmatprep.mubr.f32.mxu0 0.0
      %663 = vmatmul.mubr.f32.gmra.mrb[0].mxu0 %v379
      %v664 = vpop.f32.mrb[0].mxu0
      %v665 = vadd.f32 0.0, %v664
      %v666 = vpop.f32.mrb[0].mxu0
      %667 = vmatprep.mubr.f32.mxu0 0.0
      %668 = vmatmul.mubr.f32.gmra.mrb[0].mxu0 %v382
      %v669 = vpop.f32.mrb[0].mxu0
      %v670 = vadd.f32 0.0, %v669
      %v671 = vpop.f32.mrb[0].mxu0
      %672 = vmatprep.mubr.f32.mxu0 0.0
      %673 = vmatmul.mubr.f32.gmra.mrb[0].mxu0 %v385
      %v674 = vpop.f32.mrb[0].mxu0
      %v675 = vadd.f32 0.0, %v674
      %v676 = vpop.f32.mrb[0].mxu0
      %677 = vmatprep.mubr.f32.mxu0 0.0
      %678 = vmatmul.mubr.f32.gmra.mrb[0].mxu0 %v388
      %v679 = vpop.f32.mrb[0].mxu0
      %v680 = vadd.f32 0.0, %v679
      %v681 = vpop.f32.mrb[0].mxu0
      %682 = vmatprep.mubr.f32.mxu0 0.0
      %683 = vmatmul.mubr.f32.gmra.mrb[0].mxu0 %v391
      %v684 = vpop.f32.mrb[0].mxu0
      %v685 = vadd.f32 0.0, %v684
      %v686 = vpop.f32.mrb[0].mxu0
      %687 = vmatprep.mubr.f32.mxu0 0.0
      %688 = vmatmul.mubr.f32.gmra.mrb[0].mxu0 %v394
      %v689 = vpop.f32.mrb[0].mxu0
      %v690 = vadd.f32 0.0, %v689
      %v691 = vpop.f32.mrb[0].mxu0
      %692 = vmatprep.mubr.f32.mxu0 0.0
      %693 = vmatmul.mubr.f32.gmra.mrb[0].mxu0 %v397
      %v694 = vpop.f32.mrb[0].mxu0
      %v695 = vadd.f32 0.0, %v694
      %v696 = vpop.f32.mrb[0].mxu0
      %697 = vmatprep.mubr.f32.mxu0 0.0
      %698 = vmatmul.mubr.f32.gmra.mrb[0].mxu0 %v400
      %v699 = vpop.f32.mrb[0].mxu0
      %v700 = vadd.f32 0.0, %v699
      %v701 = vpop.f32.mrb[0].mxu0
      %702 = vmatprep.mubr.f32.mxu0 0.0
      %703 = vmatmul.mubr.f32.gmra.mrb[0].mxu0 %v403
      %v704 = vpop.f32.mrb[0].mxu0
      %v705 = vadd.f32 0.0, %v704
      %v706 = vpop.f32.mrb[0].mxu0
      %707 = vmatprep.mubr.f32.mxu0 0.0
      %708 = vmatmul.mubr.f32.gmra.mrb[0].mxu0 %v406
      %v709 = vpop.f32.mrb[0].mxu0
      %v710 = vadd.f32 0.0, %v709
      %v711 = vpop.f32.mrb[0].mxu0
      %712 = vdwg.mxu0
      %713 = vst.msk [vmem:[%s201] sm:$0xff] %vm263, %v475
      %714 = vst.msk [vmem:[%s201 + $0x8] sm:$0xff] %vm263, %v480
      %715 = vst.msk [vmem:[%s201 + $0x10] sm:$0xff] %vm263, %v485
      %716 = vst.msk [vmem:[%s201 + $0x18] sm:$0xff] %vm263, %v490
      %717 = vst.msk [vmem:[%s201 + $0x20] sm:$0xff] %vm263, %v495
      %718 = vst.msk [vmem:[%s201 + $0x28] sm:$0xff] %vm263, %v500
      %719 = vst.msk [vmem:[%s201 + $0x30] sm:$0xff] %vm263, %v505
      %720 = vst.msk [vmem:[%s201 + $0x38] sm:$0xff] %vm263, %v510
      %721 = vst.msk [vmem:[%s201 + $0x40] sm:$0xff] %vm263, %v515
      %722 = vst.msk [vmem:[%s201 + $0x48] sm:$0xff] %vm263, %v520
      %723 = vst.msk [vmem:[%s201 + $0x50] sm:$0xff] %vm263, %v525
      %724 = vst.msk [vmem:[%s201 + $0x58] sm:$0xff] %vm263, %v530
      %725 = vst.msk [vmem:[%s201 + $0x60] sm:$0xff] %vm263, %v535
      %726 = vst.msk [vmem:[%s201 + $0x68] sm:$0xff] %vm263, %v540
      %727 = vst.msk [vmem:[%s201 + $0x70] sm:$0xff] %vm263, %v545
      %728 = vst.msk [vmem:[%s201 + $0x78] sm:$0xff] %vm263, %v550
      %729 = vst.msk [vmem:[%s201 + $0x80] sm:$0xff] %vm263, %v555
      %730 = vst.msk [vmem:[%s201 + $0x88] sm:$0xff] %vm263, %v560
      %731 = vst.msk [vmem:[%s201 + $0x90] sm:$0xff] %vm263, %v565
      %732 = vst.msk [vmem:[%s201 + $0x98] sm:$0xff] %vm263, %v570
      %733 = vst.msk [vmem:[%s201 + $0xa0] sm:$0xff] %vm263, %v575
      %734 = vst.msk [vmem:[%s201 + $0xa8] sm:$0xff] %vm263, %v580
      %735 = vst.msk [vmem:[%s201 + $0xb0] sm:$0xff] %vm263, %v585
      %736 = vst.msk [vmem:[%s201 + $0xb8] sm:$0xff] %vm263, %v590
      %737 = vst.msk [vmem:[%s201 + $0xc0] sm:$0xff] %vm263, %v595
      %738 = vst.msk [vmem:[%s201 + $0xc8] sm:$0xff] %vm263, %v600
      %739 = vst.msk [vmem:[%s201 + $0xd0] sm:$0xff] %vm263, %v605
      %740 = vst.msk [vmem:[%s201 + $0xd8] sm:$0xff] %vm263, %v610
      %741 = vst.msk [vmem:[%s201 + $0xe0] sm:$0xff] %vm263, %v615
      %742 = vst.msk [vmem:[%s201 + $0xe8] sm:$0xff] %vm263, %v620
      %743 = vst.msk [vmem:[%s201 + $0xf0] sm:$0xff] %vm263, %v625
      %744 = vst.msk [vmem:[%s201 + $0xf8] sm:$0xff] %vm263, %v630
      %745 = vst.msk [vmem:[%s201 + $0x100] sm:$0xff] %vm263, %v635
      %746 = vst.msk [vmem:[%s201 + $0x108] sm:$0xff] %vm263, %v640
      %747 = vst.msk [vmem:[%s201 + $0x110] sm:$0xff] %vm263, %v645
      %748 = vst.msk [vmem:[%s201 + $0x118] sm:$0xff] %vm263, %v650
      %749 = vst.msk [vmem:[%s201 + $0x120] sm:$0xff] %vm263, %v655
      %750 = vst.msk [vmem:[%s201 + $0x128] sm:$0xff] %vm263, %v660
      %751 = vst.msk [vmem:[%s201 + $0x130] sm:$0xff] %vm263, %v665
      %752 = vst.msk [vmem:[%s201 + $0x138] sm:$0xff] %vm263, %v670
      %753 = vst.msk [vmem:[%s201 + $0x140] sm:$0xff] %vm263, %v675
      %754 = vst.msk [vmem:[%s201 + $0x148] sm:$0xff] %vm263, %v680
      %755 = vst.msk [vmem:[%s201 + $0x150] sm:$0xff] %vm263, %v685
      %756 = vst.msk [vmem:[%s201 + $0x158] sm:$0xff] %vm263, %v690
      %757 = vst.msk [vmem:[%s201 + $0x160] sm:$0xff] %vm263, %v695
      %758 = vst.msk [vmem:[%s201 + $0x168] sm:$0xff] %vm263, %v700
      %759 = vst.msk [vmem:[%s201 + $0x170] sm:$0xff] %vm263, %v705
      %760 = vst.msk [vmem:[%s201 + $0x178] sm:$0xff] %vm263, %v710
      %s761 = smul.u32 48, %s18
      %p762 = scmp.lt.s32.totalorder %s17, 1
      %s763 = scalar_select %p762, %s17, 1
      %p764 = scmp.lt.s32.totalorder %s761, 47
      %s765 = scalar_select %p764, %s761, 47
      %s766 = smul.addr %s763, 48
      %s767 = sadd.s32 %s765, %s766
      %s768 = smul.addr %s767, 8
      %s769 = scalar_lea.vmem %s2, %s768
      // Predicated region
      $region29: #{tpu_custom_call.1} parent=27 // pred_check
        %p770 = pneg %p99
      $region30: #{tpu_custom_call.1} parent=27 // pred_check_branch
        %772 = sbr.rel (%p770) target = $region32
      $region31: #{tpu_custom_call.1} parent=27 // pred_region
        %s773 = smul.u32 48, %s18
      $region32: #{tpu_custom_call.1} parent=27 // pred_fallthru
        _
    $region28: #{tpu_custom_call.1} parent=5 // pred_fallthru
      _
    %p774 = scmp.le.s32.totalorder 2, %s8
    // Predicated region
    $region33: #{tpu_custom_call.1} parent=5 // pred_check
      %p775 = pneg %p774
    $region34: #{tpu_custom_call.1} parent=5 // pred_check_branch
      %777 = sbr.rel (%p775) target = $region36
    $region35: #{tpu_custom_call.1} parent=5 // pred_region
      %s778 = ssub.s32 %s8, 2
      // Predicated region
      $region37: #{tpu_custom_call.1} parent=35 // pred_check
        %p779 = pneg %p105
      $region38: #{tpu_custom_call.1} parent=35 // pred_check_branch
        %781 = sbr.rel (%p779) target = $region40
      $region39: #{tpu_custom_call.1} parent=35 // pred_region
        %s782 = smul.u32 48, %s20
        %p783 = scmp.lt.s32.totalorder %s19, 1
        %s784 = scalar_select %p783, %s19, 1
        %p785 = scmp.lt.s32.totalorder %s782, 47
        %s786 = scalar_select %p785, %s782, 47
        %s787 = smul.addr %s784, 48
        %s788 = sadd.s32 %s786, %s787
        %s789 = smul.addr %s788, 8
        %s790 = scalar_lea.vmem %s2, %s789
      $region40: #{tpu_custom_call.1} parent=35 // pred_fallthru
        _
    $region36: #{tpu_custom_call.1} parent=5 // pred_fallthru
      _
  $region6: #{tpu_custom_call.1} parent=0 // loop_footer
    %s12 = sadd.s32 1, %s8
  $region7: #{tpu_custom_call.1} parent=0 // loop_footer_branch
    %7 = sbr.rel target = $region3
  $region8: #{tpu_custom_call.1} parent=0 // loop_exit
    _

</llo_original>
